<compile_context>
chip_gen: v5e
topology: v5e:2x2
jax: 0.10.0
libtpu: 0.0.40
codegen_flags: <defaults>
</compile_context>

<pallas_src>
import functools

import jax
import jax.numpy as jnp
from jax import lax
from jax.experimental import pallas as pl
from jax.experimental.pallas import tpu as pltpu


def _round_up(x: int, m: int) -> int:
    return ((x + m - 1) // m) * m


def _pick_tile(n_pad: int, d_pad: int, itemsize: int) -> int:
    """Largest row tile whose working set fits a conservative VMEM budget."""
    base = 2 * 2 * n_pad * d_pad * itemsize + 3 * n_pad * d_pad * 4  # resident + f32 temps
    budget = 40 * 2**20                                              # leave headroom on v7x
    cands = ([n_pad] if n_pad <= 1024 else []) + [512, 256, 128]
    for tm in cands:
        if tm <= n_pad and n_pad % tm == 0 and base + 5 * tm * n_pad * 4 <= budget:
            return tm
    return 128


def _contrastive_reward_kernel(im_ref, s_ref, rs_ref, rim_ref, *,
                               margin: float, n: int, n_pad: int, tm: int,
                               matmul_dtype, single_tile: bool):
    eps = 1e-12

    # ---- full operands (VMEM-resident; needed for the full diagonal / RHS) ---
    im_full = im_ref[...].astype(jnp.float32)                     # (Np, Dp)
    s_full = s_ref[...].astype(jnp.float32)                       # (Np, Dp)

    inv_s = lax.rsqrt(jnp.sum(s_full * s_full, axis=-1, keepdims=True) + eps)    # (Np,1)
    inv_im = lax.rsqrt(jnp.sum(im_full * im_full, axis=-1, keepdims=True) + eps)  # (Np,1)
    s_n = s_full * inv_s                                                           # (Np, Dp)

    # cosine-sim diagonal: O(N*D) elementwise reduce (no masked N x N reduction).
    diag_col = jnp.sum(im_full * s_full, axis=-1, keepdims=True) * inv_im * inv_s  # (Np,1)
    d2 = jnp.transpose(diag_col)                                                    # (1, Np)

    # ---- this row tile (trace-time fast path: tile == whole array) -----------
    if single_tile:
        row0 = 0
        lhs = im_full * inv_im                                     # reuse full normalization
        d1 = diag_col                                              # (Np, 1)
    else:
        row0 = pl.multiple_of(pl.program_id(0) * tm, tm)
        im_t = im_ref[pl.ds(row0, tm), :].astype(jnp.float32)      # (TM, Dp)
        s_t = s_ref[pl.ds(row0, tm), :].astype(jnp.float32)        # (TM, Dp)
        inv_im_t = lax.rsqrt(jnp.sum(im_t * im_t, axis=-1, keepdims=True) + eps)
        inv_s_t = lax.rsqrt(jnp.sum(s_t * s_t, axis=-1, keepdims=True) + eps)
        lhs = im_t * inv_im_t                                      # (TM, Dp)
        d1 = jnp.sum(lhs * s_t, axis=-1, keepdims=True) * inv_s_t  # (TM, 1)

    rhs = s_n
    if matmul_dtype is not None:                                   # bf16 MXU feed (v6e/v7x)
        lhs = lhs.astype(matmul_dtype)
        rhs = rhs.astype(matmul_dtype)
    # Contract dim 1 of both operands: MXU consumes RHS transposed natively.
    scores = lax.dot_general(lhs, rhs, (((1,), (1,)), ((), ())),
                             preferred_element_type=jnp.float32)   # (TM, Np)

    reward_s = jnp.maximum(d1 - scores - margin, 0.0)
    reward_im = jnp.maximum(d2 - scores - margin, 0.0)

    # Only mask out *padding* (trace-time decision); the eye mask is gone — the
    # diagonal's relu(-margin) contribution is corrected in the wrapper.
    if n_pad > n:
        col_valid = lax.broadcasted_iota(jnp.int32, (1, n_pad), 1) < n
        row_valid = (row0 + lax.broadcasted_iota(jnp.int32, (tm, 1), 0)) < n
        reward_s = jnp.where(col_valid, reward_s, 0.0)
        reward_im = jnp.where(row_valid, reward_im, 0.0)

    rs_ref[...] = jnp.sum(reward_s, axis=1)[None, :]               # (1, TM)  row sums
    rim_ref[...] = jnp.sum(reward_im, axis=0)[None, None, :]       # (1,1,Np) partial col sums


def contrastive_reward(im: jax.Array, s: jax.Array, margin: float = 0.0, *,
                       matmul_dtype=None, tile=None) -> jax.Array:
    """Pallas TPU implementation of ContrastiveReward.forward (sh-loss)."""
    assert im.shape == s.shape and im.ndim == 2
    n, d = im.shape

    n_pad = _round_up(n, 128)          # lane-dense scores columns & output stores
    d_pad = _round_up(d, 128)          # lane-dense embedding dim
    itemsize = jnp.dtype(im.dtype).itemsize

    tm = int(tile) if tile is not None else _pick_tile(n_pad, d_pad, itemsize)
    assert n_pad % tm == 0 and tm % 128 == 0
    num_tiles = n_pad // tm
    single_tile = num_tiles == 1

    if (n_pad, d_pad) != (n, d):
        im = jnp.pad(im, ((0, n_pad - n), (0, d_pad - d)))
        s = jnp.pad(s, ((0, n_pad - n), (0, d_pad - d)))

    vmem_est = (
        2 * 2 * n_pad * d_pad * itemsize      # im + s resident (double-buffered)
        + 3 * n_pad * d_pad * 4               # f32 normalized copies / temporaries
        + 5 * tm * n_pad * 4                  # scores / reward slabs per tile
        + 2 * 2 * (tm + n_pad) * 4            # outputs (double-buffered)
        + (2 << 20)                           # slack
    )
    vmem_limit = int(min(max(vmem_est, 32 * 2**20), 64 * 2**20))   # stay v7x-safe

    kernel = functools.partial(
        _contrastive_reward_kernel,
        margin=float(margin), n=n, n_pad=n_pad, tm=tm,
        matmul_dtype=matmul_dtype, single_tile=single_tile)

    rs, rim = pl.pallas_call(
        kernel,
        out_shape=(
            jax.ShapeDtypeStruct((1, n_pad), jnp.float32),             # row sums
            jax.ShapeDtypeStruct((num_tiles, 1, n_pad), jnp.float32),  # per-tile col sums
        ),
        grid_spec=pltpu.PrefetchScalarGridSpec(
            num_scalar_prefetch=0,
            grid=(num_tiles,),
            in_specs=[
                pl.BlockSpec((n_pad, d_pad), lambda i: (0, 0)),    # im resident
                pl.BlockSpec((n_pad, d_pad), lambda i: (0, 0)),    # s  resident
            ],
            out_specs=(
                pl.BlockSpec((1, tm), lambda i: (0, i)),           # lane-dense row-sum slab
                pl.BlockSpec((1, 1, n_pad), lambda i: (i, 0, 0)),  # per-tile partial col sums
            ),
        ),
        compiler_params=pltpu.CompilerParams(
            dimension_semantics=("parallel",),        # v7x: split row tiles across TCs
            vmem_limit_bytes=vmem_limit,
        ),
    )(im, s)

    # Diagonal contributes relu(-margin) to each row/col sum (no-op for margin >= 0).
    corr = max(-float(margin), 0.0)
    rs_sums = rs[0, :n]
    rim_sums = jnp.sum(rim[:, 0, :n], axis=0)
    return (rs_sums + rim_sums - 2.0 * corr) * (1.0 / n)


def _reference(im, s, margin=0.0):
    im_n = im / jnp.linalg.norm(im, axis=-1, keepdims=True)
    s_n = s / jnp.linalg.norm(s, axis=-1, keepdims=True)
    scores = im_n @ s_n.T
    diag = jnp.diag(scores)[:, None]
    eye = jnp.eye(scores.shape[0], dtype=bool)
    reward_s = jnp.where(eye, 0.0, jnp.maximum(diag - scores - margin, 0.0))
    reward_im = jnp.where(eye, 0.0, jnp.maximum(diag.T - scores - margin, 0.0))
    return reward_s.mean(axis=1) + reward_im.mean(axis=0)


if __name__ == "__main__":
    key = jax.random.PRNGKey(0)
    k_im, k_s = jax.random.split(key)
    N, D = 8, 32  # small batch of N image / sentence embedding pairs
    im = jax.random.normal(k_im, (N, D), dtype=jnp.float32)
    s = jax.random.normal(k_s, (N, D), dtype=jnp.float32)

    # f32 single-tile fast path: exact match vs reference (margin = 0, > 0, < 0).
    for m in (0.0, 0.2, -0.05):
        out = jax.block_until_ready(contrastive_reward(im, s, margin=m))
        ref = _reference(im, s, margin=m)
        assert out.shape == (N,)
        assert jnp.allclose(out, ref, atol=1e-5, rtol=1e-5), (m, out, ref)

    # Multi-tile path (forced 128-row tiles) with row/column padding (N=300 -> 384).
    N2, D2 = 300, 64
    im2 = jax.random.normal(k_im, (N2, D2), dtype=jnp.float32)
    s2 = jax.random.normal(k_s, (N2, D2), dtype=jnp.float32)
    out2 = jax.block_until_ready(contrastive_reward(im2, s2, margin=0.1, tile=128))
    ref2 = _reference(im2, s2, margin=0.1)
    assert out2.shape == (N2,)
    assert jnp.allclose(out2, ref2, atol=1e-4, rtol=1e-4), (out2, ref2)

    # bf16 MXU feed (v6e/v7x fast path): loose tolerance for bf16 rounding.
    out_bf16 = jax.block_until_ready(
        contrastive_reward(im, s, margin=0.0, matmul_dtype=jnp.bfloat16))
    assert jnp.allclose(out_bf16, _reference(im, s, 0.0), atol=5e-2), out_bf16

    print("KERNEL_OK")
</pallas_src>

<mosaic_0001>
module attributes {stable_mosaic.version = 11 : i64} {
  func.func @_contrastive_reward_kernel(%arg0: i32, %arg1: memref<128x128xf32, #tpu.memory_space<vmem>>, %arg2: memref<128x128xf32, #tpu.memory_space<vmem>>, %arg3: memref<1x128xf32, #tpu.memory_space<vmem>>, %arg4: memref<1x1x128xf32, #tpu.memory_space<vmem>>) attributes {dimension_semantics = [#tpu.dimension_semantics<parallel>], iteration_bounds = array<i64: 1>, scalar_prefetch = 0 : i64, scratch_operands = 0 : i64, tpu.core_type = #tpu.core_type<tc>, window_params = [{pipeline_mode = #tpu.pipeline_mode<synchronous>, transform_indices = @transform_0, window_bounds = array<i64: 128, 128>}, {pipeline_mode = #tpu.pipeline_mode<synchronous>, transform_indices = @transform_1, window_bounds = array<i64: 128, 128>}, {transform_indices = @transform_2, window_bounds = array<i64: 1, 128>}, {transform_indices = @transform_3, window_bounds = array<i64: 1, 1, 128>}]} {
    %c0 = arith.constant 0 : index
    %c0_0 = arith.constant 0 : index
    %0 = vector.load %arg1[%c0, %c0_0] : memref<128x128xf32, #tpu.memory_space<vmem>>, vector<128x128xf32>
    %c0_1 = arith.constant 0 : index
    %c0_2 = arith.constant 0 : index
    %1 = vector.load %arg2[%c0_1, %c0_2] : memref<128x128xf32, #tpu.memory_space<vmem>>, vector<128x128xf32>
    %2 = arith.mulf %1, %1 : vector<128x128xf32>
    %cst = arith.constant dense<0.000000e+00> : vector<128xf32>
    %3 = vector.multi_reduction <add>, %2, %cst [1] : vector<128x128xf32> to vector<128xf32>
    %4 = vector.shape_cast %3 : vector<128xf32> to vector<128x1xf32>
    %cst_3 = arith.constant 9.99999996E-13 : f32
    %5 = vector.broadcast %cst_3 : f32 to vector<128x1xf32>
    %6 = arith.addf %4, %5 : vector<128x1xf32>
    %7 = math.rsqrt %6 : vector<128x1xf32>
    %8 = arith.mulf %0, %0 : vector<128x128xf32>
    %cst_4 = arith.constant dense<0.000000e+00> : vector<128xf32>
    %9 = vector.multi_reduction <add>, %8, %cst_4 [1] : vector<128x128xf32> to vector<128xf32>
    %10 = vector.shape_cast %9 : vector<128xf32> to vector<128x1xf32>
    %cst_5 = arith.constant 9.99999996E-13 : f32
    %11 = vector.broadcast %cst_5 : f32 to vector<128x1xf32>
    %12 = arith.addf %10, %11 : vector<128x1xf32>
    %13 = math.rsqrt %12 : vector<128x1xf32>
    %14 = vector.broadcast %7 : vector<128x1xf32> to vector<128x128xf32>
    %15 = arith.mulf %1, %14 : vector<128x128xf32>
    %16 = arith.mulf %0, %1 : vector<128x128xf32>
    %cst_6 = arith.constant dense<0.000000e+00> : vector<128xf32>
    %17 = vector.multi_reduction <add>, %16, %cst_6 [1] : vector<128x128xf32> to vector<128xf32>
    %18 = vector.shape_cast %17 : vector<128xf32> to vector<128x1xf32>
    %19 = arith.mulf %18, %13 : vector<128x1xf32>
    %20 = arith.mulf %19, %7 : vector<128x1xf32>
    %21 = tpu.transpose %20, [1, 0] : vector<128x1xf32> -> vector<1x128xf32>
    %22 = vector.broadcast %13 : vector<128x1xf32> to vector<128x128xf32>
    %23 = arith.mulf %0, %22 : vector<128x128xf32>
    %cst_7 = arith.constant dense<0.000000e+00> : vector<128x128xf32>
    %24 = tpu.matmul %23, %15, %cst_7 {dimension_numbers = #tpu.dot_dimension_numbers<[1], [1], [0], [0], [0, 0, 1, 0], [], []>} : vector<128x128xf32>, vector<128x128xf32>, vector<128x128xf32> -> vector<128x128xf32>
    %25 = vector.broadcast %20 : vector<128x1xf32> to vector<128x128xf32>
    %26 = arith.subf %25, %24 : vector<128x128xf32>
    %cst_8 = arith.constant 0.000000e+00 : f32
    %27 = vector.broadcast %cst_8 : f32 to vector<128x128xf32>
    %28 = arith.subf %26, %27 : vector<128x128xf32>
    %cst_9 = arith.constant 0.000000e+00 : f32
    %29 = vector.broadcast %cst_9 : f32 to vector<128x128xf32>
    %30 = arith.maximumf %28, %29 : vector<128x128xf32>
    %31 = vector.broadcast %21 : vector<1x128xf32> to vector<128x128xf32>
    %32 = arith.subf %31, %24 : vector<128x128xf32>
    %cst_10 = arith.constant 0.000000e+00 : f32
    %33 = vector.broadcast %cst_10 : f32 to vector<128x128xf32>
    %34 = arith.subf %32, %33 : vector<128x128xf32>
    %cst_11 = arith.constant 0.000000e+00 : f32
    %35 = vector.broadcast %cst_11 : f32 to vector<128x128xf32>
    %36 = arith.maximumf %34, %35 : vector<128x128xf32>
    %37 = tpu.iota {dimensions = array<i32: 1>} : vector<1x128xi32>
    %c8_i32 = arith.constant 8 : i32
    %38 = vector.broadcast %c8_i32 : i32 to vector<1x128xi32>
    %39 = arith.cmpi slt, %37, %38 : vector<1x128xi32>
    %40 = tpu.iota {dimensions = array<i32: 0>} : vector<128x1xi32>
    %c0_i32 = arith.constant 0 : i32
    %41 = vector.broadcast %c0_i32 : i32 to vector<128x1xi32>
    %42 = arith.addi %41, %40 : vector<128x1xi32>
    %c8_i32_12 = arith.constant 8 : i32
    %43 = vector.broadcast %c8_i32_12 : i32 to vector<128x1xi32>
    %44 = arith.cmpi slt, %42, %43 : vector<128x1xi32>
    %cst_13 = arith.constant 0.000000e+00 : f32
    %45 = vector.shape_cast %39 : vector<1x128xi1> to vector<1x128xi1>
    %46 = vector.broadcast %45 : vector<1x128xi1> to vector<128x128xi1>
    %47 = vector.broadcast %cst_13 : f32 to vector<128x128xf32>
    %48 = arith.select %46, %30, %47 : vector<128x128xi1>, vector<128x128xf32>
    %cst_14 = arith.constant 0.000000e+00 : f32
    %49 = vector.shape_cast %44 : vector<128x1xi1> to vector<128x1xi1>
    %50 = vector.broadcast %49 : vector<128x1xi1> to vector<128x128xi1>
    %51 = vector.broadcast %cst_14 : f32 to vector<128x128xf32>
    %52 = arith.select %50, %36, %51 : vector<128x128xi1>, vector<128x128xf32>
    %cst_15 = arith.constant dense<0.000000e+00> : vector<128xf32>
    %53 = vector.multi_reduction <add>, %48, %cst_15 [1] : vector<128x128xf32> to vector<128xf32>
    %54 = vector.shape_cast %53 : vector<128xf32> to vector<1x128xf32>
    %c0_16 = arith.constant 0 : index
    %c0_17 = arith.constant 0 : index
    %55 = vector.load %arg3[%c0_16, %c0_17] : memref<1x128xf32, #tpu.memory_space<vmem>>, vector<1x128xf32>
    tpu.vector_store %arg3[%c0_16, %c0_17], %54 {strides = array<i32>} : memref<1x128xf32, #tpu.memory_space<vmem>>, vector<1x128xf32>,
    %cst_18 = arith.constant dense<0.000000e+00> : vector<128xf32>
    %56 = vector.multi_reduction <add>, %52, %cst_18 [0] : vector<128x128xf32> to vector<128xf32>
    %57 = vector.shape_cast %56 : vector<128xf32> to vector<1x1x128xf32>
    %c0_19 = arith.constant 0 : index
    %c0_20 = arith.constant 0 : index
    %c0_21 = arith.constant 0 : index
    %58 = vector.load %arg4[%c0_19, %c0_20, %c0_21] : memref<1x1x128xf32, #tpu.memory_space<vmem>>, vector<1x1x128xf32>
    tpu.vector_store %arg4[%c0_19, %c0_20, %c0_21], %57 {strides = array<i32>} : memref<1x1x128xf32, #tpu.memory_space<vmem>>, vector<1x1x128xf32>,
    return
  }
  func.func @transform_0(%arg0: i32) -> (i32, i32) {
    %c0_i32 = arith.constant 0 : i32
    %c0_i32_0 = arith.constant 0 : i32
    %c0_i32_1 = arith.constant 0 : i32
    return %c0_i32, %c0_i32_0 : i32, i32
  }
  func.func @transform_1(%arg0: i32) -> (i32, i32) {
    %c0_i32 = arith.constant 0 : i32
    %c0_i32_0 = arith.constant 0 : i32
    %c0_i32_1 = arith.constant 0 : i32
    return %c0_i32, %c0_i32_0 : i32, i32
  }
  func.func @transform_2(%arg0: i32) -> (i32, i32) {
    %c0_i32 = arith.constant 0 : i32
    %c0_i32_0 = arith.constant 0 : i32
    return %c0_i32, %arg0 : i32, i32
  }
  func.func @transform_3(%arg0: i32) -> (i32, i32, i32) {
    %c0_i32 = arith.constant 0 : i32
    %c0_i32_0 = arith.constant 0 : i32
    %c0_i32_1 = arith.constant 0 : i32
    return %arg0, %c0_i32, %c0_i32_0 : i32, i32, i32
  }
}

</mosaic_0001>

<llo_original>
// kernel: tpu_custom_call.1
$region0: #{tpu_custom_call.1}
  #allocation0 [shape = 'u32[]', space=smem, size = 0x4, offset = 0x4, fixed_abs, tag = 'smem constant byte address 0x4 - core index']
  #allocation1 [shape = 'u32[72,128]{1,0:T(1,128)}', space=vmem, size = 0x9000, scoped, tag = 'internal scratch']
  %s0 = inlined_call_operand.hbm [shape: f32[128,128], index: 0, kind: input, shape index: {}]
  %s1 = inlined_call_operand.hbm [shape: f32[128,128], index: 1, kind: input, shape index: {}]
  %s2 = inlined_call_operand.hbm [shape: f32[1,128], index: 2, kind: output, shape index: {0}]
  %s3 = inlined_call_operand.hbm [shape: f32[1,1,128], index: 3, kind: output, shape index: {1}]
  %4 = xla_tuple %s2, %s3
  %s5 = sld [smem:[#allocation0]]
  $region34: #{tpu_custom_call.1} parent=0
    _
  %s7 = ssub.s32 1, %s5
  %s8 = scalar_select 0, %s7, %s5
  $region1: #{tpu_custom_call.1} parent=0
    #allocation2 [shape = 'u8[65536]{0}', space=vmem, size = 0x10000, scoped, tag = 'input window, operand 0, single buffered']
    #allocation3 [shape = 's32[1]{0}', space=sflag, size = 0x4, scoped, tag = 'scoped memory for tpu_custom_call.1']
    #allocation4 [shape = 's32[1]{0}', space=sflag, size = 0x4, scoped, tag = 'scoped memory for tpu_custom_call.1']
    #allocation5 [shape = 'u8[65536]{0}', space=vmem, size = 0x10000, scoped, tag = 'input window, operand 1, single buffered']
    #allocation6 [shape = 's32[1]{0}', space=sflag, size = 0x4, scoped, tag = 'scoped memory for tpu_custom_call.1']
    #allocation7 [shape = 'u8[512]{0}', space=vmem, size = 0x400, scoped, tag = 'output window, operand 0, single buffered']
    #allocation8 [shape = 'u8[512]{0}', space=vmem, size = 0x400, scoped, tag = 'output window, operand 1, single buffered']
    #allocation9 [shape = 's32[1]{0}', space=sflag, size = 0x4, scoped, tag = 'scoped memory for tpu_custom_call.1']
    %9 = vsyncpa [#allocation3], 0
    %10 = vsyncpa [#allocation6], 0
    %11 = vsyncpa [#allocation4], 0
    %12 = vsyncpa [#allocation9], 0
    // Predicated region
    $region2: #{tpu_custom_call.1} parent=1 // pred_check
      _
    $region3: #{tpu_custom_call.1} parent=1 // pred_check_branch
      %14 = sbr.rel (0) target = $region5
    $region4: #{tpu_custom_call.1} parent=1 // pred_region
      %16 = vsyncadd [#allocation3], 0
      %s17 = sshll.u32 %s0, 4
      %s18 = int_to_ptr.hbm [resolvable:$true] %s17
      %s19 = sshll.u32 [#allocation2], 4
      %s20 = int_to_ptr.vmem [resolvable:$true] %s19
      %25 = dma.hbm_to_vmem [thread:$0]  %s18, 2048, %s20, [#allocation3], 128, 128, 8
    $region5: #{tpu_custom_call.1} parent=1 // pred_fallthru
      _
    // Predicated region
    $region6: #{tpu_custom_call.1} parent=1 // pred_check
      _
    $region7: #{tpu_custom_call.1} parent=1 // pred_check_branch
      %27 = sbr.rel (0) target = $region9
    $region8: #{tpu_custom_call.1} parent=1 // pred_region
      %29 = vsyncadd [#allocation6], 0
      %s30 = sshll.u32 %s1, 4
      %s31 = int_to_ptr.hbm [resolvable:$true] %s30
      %s32 = sshll.u32 [#allocation5], 4
      %s33 = int_to_ptr.vmem [resolvable:$true] %s32
      %38 = dma.hbm_to_vmem [thread:$0]  %s31, 2048, %s33, [#allocation6], 128, 128, 8
    $region9: #{tpu_custom_call.1} parent=1 // pred_fallthru
      _
    // Predicated region
    $region10: #{tpu_custom_call.1} parent=1 // pred_check
      _
    $region11: #{tpu_custom_call.1} parent=1 // pred_check_branch
      %40 = sbr.rel (0) target = $region13
    $region12: #{tpu_custom_call.1} parent=1 // pred_region
      %42 = dma.done [#allocation3], 2048
    $region13: #{tpu_custom_call.1} parent=1 // pred_fallthru
      _
    // Predicated region
    $region14: #{tpu_custom_call.1} parent=1 // pred_check
      _
    $region15: #{tpu_custom_call.1} parent=1 // pred_check_branch
      %44 = sbr.rel (0) target = $region17
    $region16: #{tpu_custom_call.1} parent=1 // pred_region
      %46 = dma.done [#allocation6], 2048
    $region17: #{tpu_custom_call.1} parent=1 // pred_fallthru
      _
    %v47 = vld [vmem:[#allocation2] sm:$0xff]
    %v48 = vld [vmem:[#allocation2 + $0x8] sm:$0xff]
    %v49 = vld [vmem:[#allocation2 + $0x10] sm:$0xff]
    %v50 = vld [vmem:[#allocation2 + $0x18] sm:$0xff]
    %v51 = vld [vmem:[#allocation2 + $0x20] sm:$0xff]
    %v52 = vld [vmem:[#allocation2 + $0x28] sm:$0xff]
    %v53 = vld [vmem:[#allocation2 + $0x30] sm:$0xff]
    %v54 = vld [vmem:[#allocation2 + $0x38] sm:$0xff]
    %v55 = vld [vmem:[#allocation2 + $0x40] sm:$0xff]
    %v56 = vld [vmem:[#allocation2 + $0x48] sm:$0xff]
    %v57 = vld [vmem:[#allocation2 + $0x50] sm:$0xff]
    %v58 = vld [vmem:[#allocation2 + $0x58] sm:$0xff]
    %v59 = vld [vmem:[#allocation2 + $0x60] sm:$0xff]
    %v60 = vld [vmem:[#allocation2 + $0x68] sm:$0xff]
    %v61 = vld [vmem:[#allocation2 + $0x70] sm:$0xff]
    %v62 = vld [vmem:[#allocation2 + $0x78] sm:$0xff]
    %v63 = vld [vmem:[#allocation5] sm:$0xff]
    %v64 = vld [vmem:[#allocation5 + $0x8] sm:$0xff]
    %v65 = vld [vmem:[#allocation5 + $0x10] sm:$0xff]
    %v66 = vld [vmem:[#allocation5 + $0x18] sm:$0xff]
    %v67 = vld [vmem:[#allocation5 + $0x20] sm:$0xff]
    %v68 = vld [vmem:[#allocation5 + $0x28] sm:$0xff]
    %v69 = vld [vmem:[#allocation5 + $0x30] sm:$0xff]
    %v70 = vld [vmem:[#allocation5 + $0x38] sm:$0xff]
    %v71 = vld [vmem:[#allocation5 + $0x40] sm:$0xff]
    %v72 = vld [vmem:[#allocation5 + $0x48] sm:$0xff]
    %v73 = vld [vmem:[#allocation5 + $0x50] sm:$0xff]
    %v74 = vld [vmem:[#allocation5 + $0x58] sm:$0xff]
    %v75 = vld [vmem:[#allocation5 + $0x60] sm:$0xff]
    %v76 = vld [vmem:[#allocation5 + $0x68] sm:$0xff]
    %v77 = vld [vmem:[#allocation5 + $0x70] sm:$0xff]
    %v78 = vld [vmem:[#allocation5 + $0x78] sm:$0xff]
    %v79 = vmul.f32 %v63, %v63
    %v80 = vmul.f32 %v64, %v64
    %v81 = vmul.f32 %v65, %v65
    %v82 = vmul.f32 %v66, %v66
    %v83 = vmul.f32 %v67, %v67
    %v84 = vmul.f32 %v68, %v68
    %v85 = vmul.f32 %v69, %v69
    %v86 = vmul.f32 %v70, %v70
    %v87 = vmul.f32 %v71, %v71
    %v88 = vmul.f32 %v72, %v72
    %v89 = vmul.f32 %v73, %v73
    %v90 = vmul.f32 %v74, %v74
    %v91 = vmul.f32 %v75, %v75
    %v92 = vmul.f32 %v76, %v76
    %v93 = vmul.f32 %v77, %v77
    %v94 = vmul.f32 %v78, %v78
    %95 = vadd.xlane.f32.xlu0 %v79
    %v96 = vpop.xlane.xlu0 %95
    %97 = vadd.xlane.f32.xlu0 %v80
    %v98 = vpop.xlane.xlu0 %97
    %99 = vadd.xlane.f32.xlu0 %v81
    %v100 = vpop.xlane.xlu0 %99
    %101 = vadd.xlane.f32.xlu0 %v82
    %v102 = vpop.xlane.xlu0 %101
    %103 = vadd.xlane.f32.xlu0 %v83
    %v104 = vpop.xlane.xlu0 %103
    %105 = vadd.xlane.f32.xlu0 %v84
    %v106 = vpop.xlane.xlu0 %105
    %107 = vadd.xlane.f32.xlu0 %v85
    %v108 = vpop.xlane.xlu0 %107
    %109 = vadd.xlane.f32.xlu0 %v86
    %v110 = vpop.xlane.xlu0 %109
    %111 = vadd.xlane.f32.xlu0 %v87
    %v112 = vpop.xlane.xlu0 %111
    %113 = vadd.xlane.f32.xlu0 %v88
    %v114 = vpop.xlane.xlu0 %113
    %115 = vadd.xlane.f32.xlu0 %v89
    %v116 = vpop.xlane.xlu0 %115
    %117 = vadd.xlane.f32.xlu0 %v90
    %v118 = vpop.xlane.xlu0 %117
    %119 = vadd.xlane.f32.xlu0 %v91
    %v120 = vpop.xlane.xlu0 %119
    %121 = vadd.xlane.f32.xlu0 %v92
    %v122 = vpop.xlane.xlu0 %121
    %123 = vadd.xlane.f32.xlu0 %v93
    %v124 = vpop.xlane.xlu0 %123
    %125 = vadd.xlane.f32.xlu0 %v94
    %v126 = vpop.xlane.xlu0 %125
    %v127 = vadd.f32 %v96, 1e-12
    %v128 = vadd.f32 %v98, 1e-12
    %v129 = vadd.f32 %v100, 1e-12
    %v130 = vadd.f32 %v102, 1e-12
    %v131 = vadd.f32 %v104, 1e-12
    %v132 = vadd.f32 %v106, 1e-12
    %v133 = vadd.f32 %v108, 1e-12
    %v134 = vadd.f32 %v110, 1e-12
    %v135 = vadd.f32 %v112, 1e-12
    %v136 = vadd.f32 %v114, 1e-12
    %v137 = vadd.f32 %v116, 1e-12
    %v138 = vadd.f32 %v118, 1e-12
    %v139 = vadd.f32 %v120, 1e-12
    %v140 = vadd.f32 %v122, 1e-12
    %v141 = vadd.f32 %v124, 1e-12
    %v142 = vadd.f32 %v126, 1e-12
    %v143 = vrsqrt.pop %v127
    %v144 = vmul.f32 %v143, %v127
    %v145 = vmul.f32 %v144, %v143
    %v146 = vmul.f32 0.5, %v145
    %v147 = vsub.f32 1.5, %v146
    %v148 = vmul.f32 %v143, %v147
    %vm149 = vweird.f32 %v127
    %vm150 = vweird.f32 %v143
    %vm151 = vmor %vm149, %vm150
    %v152 = vsel %vm151, %v143, %v148
    %v153 = vrsqrt.pop %v128
    %v154 = vmul.f32 %v153, %v128
    %v155 = vmul.f32 %v154, %v153
    %v156 = vmul.f32 0.5, %v155
    %v157 = vsub.f32 1.5, %v156
    %v158 = vmul.f32 %v153, %v157
    %vm159 = vweird.f32 %v128
    %vm160 = vweird.f32 %v153
    %vm161 = vmor %vm159, %vm160
    %v162 = vsel %vm161, %v153, %v158
    %v163 = vrsqrt.pop %v129
    %v164 = vmul.f32 %v163, %v129
    %v165 = vmul.f32 %v164, %v163
    %v166 = vmul.f32 0.5, %v165
    %v167 = vsub.f32 1.5, %v166
    %v168 = vmul.f32 %v163, %v167
    %vm169 = vweird.f32 %v129
    %vm170 = vweird.f32 %v163
    %vm171 = vmor %vm169, %vm170
    %v172 = vsel %vm171, %v163, %v168
    %v173 = vrsqrt.pop %v130
    %v174 = vmul.f32 %v173, %v130
    %v175 = vmul.f32 %v174, %v173
    %v176 = vmul.f32 0.5, %v175
    %v177 = vsub.f32 1.5, %v176
    %v178 = vmul.f32 %v173, %v177
    %vm179 = vweird.f32 %v130
    %vm180 = vweird.f32 %v173
    %vm181 = vmor %vm179, %vm180
    %v182 = vsel %vm181, %v173, %v178
    %v183 = vrsqrt.pop %v131
    %v184 = vmul.f32 %v183, %v131
    %v185 = vmul.f32 %v184, %v183
    %v186 = vmul.f32 0.5, %v185
    %v187 = vsub.f32 1.5, %v186
    %v188 = vmul.f32 %v183, %v187
    %vm189 = vweird.f32 %v131
    %vm190 = vweird.f32 %v183
    %vm191 = vmor %vm189, %vm190
    %v192 = vsel %vm191, %v183, %v188
    %v193 = vrsqrt.pop %v132
    %v194 = vmul.f32 %v193, %v132
    %v195 = vmul.f32 %v194, %v193
    %v196 = vmul.f32 0.5, %v195
    %v197 = vsub.f32 1.5, %v196
    %v198 = vmul.f32 %v193, %v197
    %vm199 = vweird.f32 %v132
    %vm200 = vweird.f32 %v193
    %vm201 = vmor %vm199, %vm200
    %v202 = vsel %vm201, %v193, %v198
    %v203 = vrsqrt.pop %v133
    %v204 = vmul.f32 %v203, %v133
    %v205 = vmul.f32 %v204, %v203
    %v206 = vmul.f32 0.5, %v205
    %v207 = vsub.f32 1.5, %v206
    %v208 = vmul.f32 %v203, %v207
    %vm209 = vweird.f32 %v133
    %vm210 = vweird.f32 %v203
    %vm211 = vmor %vm209, %vm210
    %v212 = vsel %vm211, %v203, %v208
    %v213 = vrsqrt.pop %v134
    %v214 = vmul.f32 %v213, %v134
    %v215 = vmul.f32 %v214, %v213
    %v216 = vmul.f32 0.5, %v215
    %v217 = vsub.f32 1.5, %v216
    %v218 = vmul.f32 %v213, %v217
    %vm219 = vweird.f32 %v134
    %vm220 = vweird.f32 %v213
    %vm221 = vmor %vm219, %vm220
    %v222 = vsel %vm221, %v213, %v218
    %v223 = vrsqrt.pop %v135
    %v224 = vmul.f32 %v223, %v135
    %v225 = vmul.f32 %v224, %v223
    %v226 = vmul.f32 0.5, %v225
    %v227 = vsub.f32 1.5, %v226
    %v228 = vmul.f32 %v223, %v227
    %vm229 = vweird.f32 %v135
    %vm230 = vweird.f32 %v223
    %vm231 = vmor %vm229, %vm230
    %v232 = vsel %vm231, %v223, %v228
    %v233 = vrsqrt.pop %v136
    %v234 = vmul.f32 %v233, %v136
    %v235 = vmul.f32 %v234, %v233
    %v236 = vmul.f32 0.5, %v235
    %v237 = vsub.f32 1.5, %v236
    %v238 = vmul.f32 %v233, %v237
    %vm239 = vweird.f32 %v136
    %vm240 = vweird.f32 %v233
    %vm241 = vmor %vm239, %vm240
    %v242 = vsel %vm241, %v233, %v238
    %v243 = vrsqrt.pop %v137
    %v244 = vmul.f32 %v243, %v137
    %v245 = vmul.f32 %v244, %v243
    %v246 = vmul.f32 0.5, %v245
    %v247 = vsub.f32 1.5, %v246
    %v248 = vmul.f32 %v243, %v247
    %vm249 = vweird.f32 %v137
    %vm250 = vweird.f32 %v243
    %vm251 = vmor %vm249, %vm250
    %v252 = vsel %vm251, %v243, %v248
    %v253 = vrsqrt.pop %v138
    %v254 = vmul.f32 %v253, %v138
    %v255 = vmul.f32 %v254, %v253
    %v256 = vmul.f32 0.5, %v255
    %v257 = vsub.f32 1.5, %v256
    %v258 = vmul.f32 %v253, %v257
    %vm259 = vweird.f32 %v138
    %vm260 = vweird.f32 %v253
    %vm261 = vmor %vm259, %vm260
    %v262 = vsel %vm261, %v253, %v258
    %v263 = vrsqrt.pop %v139
    %v264 = vmul.f32 %v263, %v139
    %v265 = vmul.f32 %v264, %v263
    %v266 = vmul.f32 0.5, %v265
    %v267 = vsub.f32 1.5, %v266
    %v268 = vmul.f32 %v263, %v267
    %vm269 = vweird.f32 %v139
    %vm270 = vweird.f32 %v263
    %vm271 = vmor %vm269, %vm270
    %v272 = vsel %vm271, %v263, %v268
    %v273 = vrsqrt.pop %v140
    %v274 = vmul.f32 %v273, %v140
    %v275 = vmul.f32 %v274, %v273
    %v276 = vmul.f32 0.5, %v275
    %v277 = vsub.f32 1.5, %v276
    %v278 = vmul.f32 %v273, %v277
    %vm279 = vweird.f32 %v140
    %vm280 = vweird.f32 %v273
    %vm281 = vmor %vm279, %vm280
    %v282 = vsel %vm281, %v273, %v278
    %v283 = vrsqrt.pop %v141
    %v284 = vmul.f32 %v283, %v141
    %v285 = vmul.f32 %v284, %v283
    %v286 = vmul.f32 0.5, %v285
    %v287 = vsub.f32 1.5, %v286
    %v288 = vmul.f32 %v283, %v287
    %vm289 = vweird.f32 %v141
    %vm290 = vweird.f32 %v283
    %vm291 = vmor %vm289, %vm290
    %v292 = vsel %vm291, %v283, %v288
    %v293 = vrsqrt.pop %v142
    %v294 = vmul.f32 %v293, %v142
    %v295 = vmul.f32 %v294, %v293
    %v296 = vmul.f32 0.5, %v295
    %v297 = vsub.f32 1.5, %v296
    %v298 = vmul.f32 %v293, %v297
    %vm299 = vweird.f32 %v142
    %vm300 = vweird.f32 %v293
    %vm301 = vmor %vm299, %vm300
    %v302 = vsel %vm301, %v293, %v298
    %v303 = vmul.f32 %v47, %v47
    %v304 = vmul.f32 %v48, %v48
    %v305 = vmul.f32 %v49, %v49
    %v306 = vmul.f32 %v50, %v50
    %v307 = vmul.f32 %v51, %v51
    %v308 = vmul.f32 %v52, %v52
    %v309 = vmul.f32 %v53, %v53
    %v310 = vmul.f32 %v54, %v54
    %v311 = vmul.f32 %v55, %v55
    %v312 = vmul.f32 %v56, %v56
    %v313 = vmul.f32 %v57, %v57
    %v314 = vmul.f32 %v58, %v58
    %v315 = vmul.f32 %v59, %v59
    %v316 = vmul.f32 %v60, %v60
    %v317 = vmul.f32 %v61, %v61
    %v318 = vmul.f32 %v62, %v62
    %319 = vadd.xlane.f32.xlu0 %v303
    %v320 = vpop.xlane.xlu0 %319
    %321 = vadd.xlane.f32.xlu0 %v304
    %v322 = vpop.xlane.xlu0 %321
    %323 = vadd.xlane.f32.xlu0 %v305
    %v324 = vpop.xlane.xlu0 %323
    %325 = vadd.xlane.f32.xlu0 %v306
    %v326 = vpop.xlane.xlu0 %325
    %327 = vadd.xlane.f32.xlu0 %v307
    %v328 = vpop.xlane.xlu0 %327
    %329 = vadd.xlane.f32.xlu0 %v308
    %v330 = vpop.xlane.xlu0 %329
    %331 = vadd.xlane.f32.xlu0 %v309
    %v332 = vpop.xlane.xlu0 %331
    %333 = vadd.xlane.f32.xlu0 %v310
    %v334 = vpop.xlane.xlu0 %333
    %335 = vadd.xlane.f32.xlu0 %v311
    %v336 = vpop.xlane.xlu0 %335
    %337 = vadd.xlane.f32.xlu0 %v312
    %v338 = vpop.xlane.xlu0 %337
    %339 = vadd.xlane.f32.xlu0 %v313
    %v340 = vpop.xlane.xlu0 %339
    %341 = vadd.xlane.f32.xlu0 %v314
    %v342 = vpop.xlane.xlu0 %341
    %343 = vadd.xlane.f32.xlu0 %v315
    %v344 = vpop.xlane.xlu0 %343
    %345 = vadd.xlane.f32.xlu0 %v316
    %v346 = vpop.xlane.xlu0 %345
    %347 = vadd.xlane.f32.xlu0 %v317
    %v348 = vpop.xlane.xlu0 %347
    %349 = vadd.xlane.f32.xlu0 %v318
    %v350 = vpop.xlane.xlu0 %349
    %v351 = vadd.f32 %v320, 1e-12
    %v352 = vadd.f32 %v322, 1e-12
    %v353 = vadd.f32 %v324, 1e-12
    %v354 = vadd.f32 %v326, 1e-12
    %v355 = vadd.f32 %v328, 1e-12
    %v356 = vadd.f32 %v330, 1e-12
    %v357 = vadd.f32 %v332, 1e-12
    %v358 = vadd.f32 %v334, 1e-12
    %v359 = vadd.f32 %v336, 1e-12
    %v360 = vadd.f32 %v338, 1e-12
    %v361 = vadd.f32 %v340, 1e-12
    %v362 = vadd.f32 %v342, 1e-12
    %v363 = vadd.f32 %v344, 1e-12
    %v364 = vadd.f32 %v346, 1e-12
    %v365 = vadd.f32 %v348, 1e-12
    %v366 = vadd.f32 %v350, 1e-12
    %v367 = vrsqrt.pop %v351
    %v368 = vmul.f32 %v367, %v351
    %v369 = vmul.f32 %v368, %v367
    %v370 = vmul.f32 0.5, %v369
    %v371 = vsub.f32 1.5, %v370
    %v372 = vmul.f32 %v367, %v371
    %vm373 = vweird.f32 %v351
    %vm374 = vweird.f32 %v367
    %vm375 = vmor %vm373, %vm374
    %v376 = vsel %vm375, %v367, %v372
    %v377 = vrsqrt.pop %v352
    %v378 = vmul.f32 %v377, %v352
    %v379 = vmul.f32 %v378, %v377
    %v380 = vmul.f32 0.5, %v379
    %v381 = vsub.f32 1.5, %v380
    %v382 = vmul.f32 %v377, %v381
    %vm383 = vweird.f32 %v352
    %vm384 = vweird.f32 %v377
    %vm385 = vmor %vm383, %vm384
    %v386 = vsel %vm385, %v377, %v382
    %v387 = vrsqrt.pop %v353
    %v388 = vmul.f32 %v387, %v353
    %v389 = vmul.f32 %v388, %v387
    %v390 = vmul.f32 0.5, %v389
    %v391 = vsub.f32 1.5, %v390
    %v392 = vmul.f32 %v387, %v391
    %vm393 = vweird.f32 %v353
    %vm394 = vweird.f32 %v387
    %vm395 = vmor %vm393, %vm394
    %v396 = vsel %vm395, %v387, %v392
    %v397 = vrsqrt.pop %v354
    %v398 = vmul.f32 %v397, %v354
    %v399 = vmul.f32 %v398, %v397
    %v400 = vmul.f32 0.5, %v399
    %v401 = vsub.f32 1.5, %v400
    %v402 = vmul.f32 %v397, %v401
    %vm403 = vweird.f32 %v354
    %vm404 = vweird.f32 %v397
    %vm405 = vmor %vm403, %vm404
    %v406 = vsel %vm405, %v397, %v402
    %v407 = vrsqrt.pop %v355
    %v408 = vmul.f32 %v407, %v355
    %v409 = vmul.f32 %v408, %v407
    %v410 = vmul.f32 0.5, %v409
    %v411 = vsub.f32 1.5, %v410
    %v412 = vmul.f32 %v407, %v411
    %vm413 = vweird.f32 %v355
    %vm414 = vweird.f32 %v407
    %vm415 = vmor %vm413, %vm414
    %v416 = vsel %vm415, %v407, %v412
    %v417 = vrsqrt.pop %v356
    %v418 = vmul.f32 %v417, %v356
    %v419 = vmul.f32 %v418, %v417
    %v420 = vmul.f32 0.5, %v419
    %v421 = vsub.f32 1.5, %v420
    %v422 = vmul.f32 %v417, %v421
    %vm423 = vweird.f32 %v356
    %vm424 = vweird.f32 %v417
    %vm425 = vmor %vm423, %vm424
    %v426 = vsel %vm425, %v417, %v422
    %v427 = vrsqrt.pop %v357
    %v428 = vmul.f32 %v427, %v357
    %v429 = vmul.f32 %v428, %v427
    %v430 = vmul.f32 0.5, %v429
    %v431 = vsub.f32 1.5, %v430
    %v432 = vmul.f32 %v427, %v431
    %vm433 = vweird.f32 %v357
    %vm434 = vweird.f32 %v427
    %vm435 = vmor %vm433, %vm434
    %v436 = vsel %vm435, %v427, %v432
    %v437 = vrsqrt.pop %v358
    %v438 = vmul.f32 %v437, %v358
    %v439 = vmul.f32 %v438, %v437
    %v440 = vmul.f32 0.5, %v439
    %v441 = vsub.f32 1.5, %v440
    %v442 = vmul.f32 %v437, %v441
    %vm443 = vweird.f32 %v358
    %vm444 = vweird.f32 %v437
    %vm445 = vmor %vm443, %vm444
    %v446 = vsel %vm445, %v437, %v442
    %v447 = vrsqrt.pop %v359
    %v448 = vmul.f32 %v447, %v359
    %v449 = vmul.f32 %v448, %v447
    %v450 = vmul.f32 0.5, %v449
    %v451 = vsub.f32 1.5, %v450
    %v452 = vmul.f32 %v447, %v451
    %vm453 = vweird.f32 %v359
    %vm454 = vweird.f32 %v447
    %vm455 = vmor %vm453, %vm454
    %v456 = vsel %vm455, %v447, %v452
    %v457 = vrsqrt.pop %v360
    %v458 = vmul.f32 %v457, %v360
    %v459 = vmul.f32 %v458, %v457
    %v460 = vmul.f32 0.5, %v459
    %v461 = vsub.f32 1.5, %v460
    %v462 = vmul.f32 %v457, %v461
    %vm463 = vweird.f32 %v360
    %vm464 = vweird.f32 %v457
    %vm465 = vmor %vm463, %vm464
    %v466 = vsel %vm465, %v457, %v462
    %v467 = vrsqrt.pop %v361
    %v468 = vmul.f32 %v467, %v361
    %v469 = vmul.f32 %v468, %v467
    %v470 = vmul.f32 0.5, %v469
    %v471 = vsub.f32 1.5, %v470
    %v472 = vmul.f32 %v467, %v471
    %vm473 = vweird.f32 %v361
    %vm474 = vweird.f32 %v467
    %vm475 = vmor %vm473, %vm474
    %v476 = vsel %vm475, %v467, %v472
    %v477 = vrsqrt.pop %v362
    %v478 = vmul.f32 %v477, %v362
    %v479 = vmul.f32 %v478, %v477
    %v480 = vmul.f32 0.5, %v479
    %v481 = vsub.f32 1.5, %v480
    %v482 = vmul.f32 %v477, %v481
    %vm483 = vweird.f32 %v362
    %vm484 = vweird.f32 %v477
    %vm485 = vmor %vm483, %vm484
    %v486 = vsel %vm485, %v477, %v482
    %v487 = vrsqrt.pop %v363
    %v488 = vmul.f32 %v487, %v363
    %v489 = vmul.f32 %v488, %v487
    %v490 = vmul.f32 0.5, %v489
    %v491 = vsub.f32 1.5, %v490
    %v492 = vmul.f32 %v487, %v491
    %vm493 = vweird.f32 %v363
    %vm494 = vweird.f32 %v487
    %vm495 = vmor %vm493, %vm494
    %v496 = vsel %vm495, %v487, %v492
    %v497 = vrsqrt.pop %v364
    %v498 = vmul.f32 %v497, %v364
    %v499 = vmul.f32 %v498, %v497
    %v500 = vmul.f32 0.5, %v499
    %v501 = vsub.f32 1.5, %v500
    %v502 = vmul.f32 %v497, %v501
    %vm503 = vweird.f32 %v364
    %vm504 = vweird.f32 %v497
    %vm505 = vmor %vm503, %vm504
    %v506 = vsel %vm505, %v497, %v502
    %v507 = vrsqrt.pop %v365
    %v508 = vmul.f32 %v507, %v365
    %v509 = vmul.f32 %v508, %v507
    %v510 = vmul.f32 0.5, %v509
    %v511 = vsub.f32 1.5, %v510
    %v512 = vmul.f32 %v507, %v511
    %vm513 = vweird.f32 %v365
    %vm514 = vweird.f32 %v507
    %vm515 = vmor %vm513, %vm514
    %v516 = vsel %vm515, %v507, %v512
    %v517 = vrsqrt.pop %v366
    %v518 = vmul.f32 %v517, %v366
    %v519 = vmul.f32 %v518, %v517
    %v520 = vmul.f32 0.5, %v519
    %v521 = vsub.f32 1.5, %v520
    %v522 = vmul.f32 %v517, %v521
    %vm523 = vweird.f32 %v366
    %vm524 = vweird.f32 %v517
    %vm525 = vmor %vm523, %vm524
    %v526 = vsel %vm525, %v517, %v522
    %v527 = vmul.f32 %v63, %v152
    %v528 = vmul.f32 %v64, %v162
    %v529 = vmul.f32 %v65, %v172
    %v530 = vmul.f32 %v66, %v182
    %v531 = vmul.f32 %v67, %v192
    %v532 = vmul.f32 %v68, %v202
    %v533 = vmul.f32 %v69, %v212
    %v534 = vmul.f32 %v70, %v222
    %v535 = vmul.f32 %v71, %v232
    %v536 = vmul.f32 %v72, %v242
    %v537 = vmul.f32 %v73, %v252
    %v538 = vmul.f32 %v74, %v262
    %v539 = vmul.f32 %v75, %v272
    %v540 = vmul.f32 %v76, %v282
    %v541 = vmul.f32 %v77, %v292
    %v542 = vmul.f32 %v78, %v302
    %v543 = vmul.f32 %v47, %v63
    %v544 = vmul.f32 %v48, %v64
    %v545 = vmul.f32 %v49, %v65
    %v546 = vmul.f32 %v50, %v66
    %v547 = vmul.f32 %v51, %v67
    %v548 = vmul.f32 %v52, %v68
    %v549 = vmul.f32 %v53, %v69
    %v550 = vmul.f32 %v54, %v70
    %v551 = vmul.f32 %v55, %v71
    %v552 = vmul.f32 %v56, %v72
    %v553 = vmul.f32 %v57, %v73
    %v554 = vmul.f32 %v58, %v74
    %v555 = vmul.f32 %v59, %v75
    %v556 = vmul.f32 %v60, %v76
    %v557 = vmul.f32 %v61, %v77
    %v558 = vmul.f32 %v62, %v78
    %559 = vadd.xlane.f32.xlu0 %v543
    %v560 = vpop.xlane.xlu0 %559
    %561 = vadd.xlane.f32.xlu0 %v544
    %v562 = vpop.xlane.xlu0 %561
    %563 = vadd.xlane.f32.xlu0 %v545
    %v564 = vpop.xlane.xlu0 %563
    %565 = vadd.xlane.f32.xlu0 %v546
    %v566 = vpop.xlane.xlu0 %565
    %567 = vadd.xlane.f32.xlu0 %v547
    %v568 = vpop.xlane.xlu0 %567
    %569 = vadd.xlane.f32.xlu0 %v548
    %v570 = vpop.xlane.xlu0 %569
    %571 = vadd.xlane.f32.xlu0 %v549
    %v572 = vpop.xlane.xlu0 %571
    %573 = vadd.xlane.f32.xlu0 %v550
    %v574 = vpop.xlane.xlu0 %573
    %575 = vadd.xlane.f32.xlu0 %v551
    %v576 = vpop.xlane.xlu0 %575
    %577 = vadd.xlane.f32.xlu0 %v552
    %v578 = vpop.xlane.xlu0 %577
    %579 = vadd.xlane.f32.xlu0 %v553
    %v580 = vpop.xlane.xlu0 %579
    %581 = vadd.xlane.f32.xlu0 %v554
    %v582 = vpop.xlane.xlu0 %581
    %583 = vadd.xlane.f32.xlu0 %v555
    %v584 = vpop.xlane.xlu0 %583
    %585 = vadd.xlane.f32.xlu0 %v556
    %v586 = vpop.xlane.xlu0 %585
    %587 = vadd.xlane.f32.xlu0 %v557
    %v588 = vpop.xlane.xlu0 %587
    %589 = vadd.xlane.f32.xlu0 %v558
    %v590 = vpop.xlane.xlu0 %589
    %v591 = vmul.f32 %v560, %v376
    %v592 = vmul.f32 %v562, %v386
    %v593 = vmul.f32 %v564, %v396
    %v594 = vmul.f32 %v566, %v406
    %v595 = vmul.f32 %v568, %v416
    %v596 = vmul.f32 %v570, %v426
    %v597 = vmul.f32 %v572, %v436
    %v598 = vmul.f32 %v574, %v446
    %v599 = vmul.f32 %v576, %v456
    %v600 = vmul.f32 %v578, %v466
    %v601 = vmul.f32 %v580, %v476
    %v602 = vmul.f32 %v582, %v486
    %v603 = vmul.f32 %v584, %v496
    %v604 = vmul.f32 %v586, %v506
    %v605 = vmul.f32 %v588, %v516
    %v606 = vmul.f32 %v590, %v526
    %v607 = vmul.f32 %v591, %v152
    %v608 = vmul.f32 %v592, %v162
    %v609 = vmul.f32 %v593, %v172
    %v610 = vmul.f32 %v594, %v182
    %v611 = vmul.f32 %v595, %v192
    %v612 = vmul.f32 %v596, %v202
    %v613 = vmul.f32 %v597, %v212
    %v614 = vmul.f32 %v598, %v222
    %v615 = vmul.f32 %v599, %v232
    %v616 = vmul.f32 %v600, %v242
    %v617 = vmul.f32 %v601, %v252
    %v618 = vmul.f32 %v602, %v262
    %v619 = vmul.f32 %v603, %v272
    %v620 = vmul.f32 %v604, %v282
    %v621 = vmul.f32 %v605, %v292
    %v622 = vmul.f32 %v606, %v302
    %623 = vxpose.xlu0.b32.start [1/16] %v607, 128
    %624 = vxpose.xlu0.b32.cont [2/16] %v608, 128
    %625 = vxpose.xlu0.b32.cont [3/16] %v609, 128
    %626 = vxpose.xlu0.b32.cont [4/16] %v610, 128
    %627 = vxpose.xlu0.b32.cont [5/16] %v611, 128
    %628 = vxpose.xlu0.b32.cont [6/16] %v612, 128
    %629 = vxpose.xlu0.b32.cont [7/16] %v613, 128
    %630 = vxpose.xlu0.b32.cont [8/16] %v614, 128
    %631 = vxpose.xlu0.b32.cont [9/16] %v615, 128
    %632 = vxpose.xlu0.b32.cont [10/16] %v616, 128
    %633 = vxpose.xlu0.b32.cont [11/16] %v617, 128
    %634 = vxpose.xlu0.b32.cont [12/16] %v618, 128
    %635 = vxpose.xlu0.b32.cont [13/16] %v619, 128
    %636 = vxpose.xlu0.b32.cont [14/16] %v620, 128
    %637 = vxpose.xlu0.b32.cont [15/16] %v621, 128
    %638 = vxpose.xlu0.b32.end [16/16] %v622, 128
    %v639 = vpop.trf.xlu0
    %v640 = vpop.trf.xlu0
    %v641 = vpop.trf.xlu0
    %v642 = vpop.trf.xlu0
    %v643 = vpop.trf.xlu0
    %v644 = vpop.trf.xlu0
    %v645 = vpop.trf.xlu0
    %v646 = vpop.trf.xlu0
    %v647 = vpop.trf.xlu0
    %v648 = vpop.trf.xlu0
    %v649 = vpop.trf.xlu0
    %v650 = vpop.trf.xlu0
    %v651 = vpop.trf.xlu0
    %v652 = vpop.trf.xlu0
    %v653 = vpop.trf.xlu0
    %v654 = vpop.trf.xlu0
    %v655 = vmul.f32 %v47, %v376
    %v656 = vmul.f32 %v48, %v386
    %v657 = vmul.f32 %v49, %v396
    %v658 = vmul.f32 %v50, %v406
    %v659 = vmul.f32 %v51, %v416
    %v660 = vmul.f32 %v52, %v426
    %v661 = vmul.f32 %v53, %v436
    %v662 = vmul.f32 %v54, %v446
    %v663 = vmul.f32 %v55, %v456
    %v664 = vmul.f32 %v56, %v466
    %v665 = vmul.f32 %v57, %v476
    %v666 = vmul.f32 %v58, %v486
    %v667 = vmul.f32 %v59, %v496
    %v668 = vmul.f32 %v60, %v506
    %v669 = vmul.f32 %v61, %v516
    %v670 = vmul.f32 %v62, %v526
    %671 = vmatpush.xpose.msra.mxu0 %v542
    %672 = vmatpush.xpose.msra.mxu0 %v541
    %673 = vmatpush.xpose.msra.mxu0 %v540
    %674 = vmatpush.xpose.msra.mxu0 %v539
    %675 = vmatpush.xpose.msra.mxu0 %v538
    %676 = vmatpush.xpose.msra.mxu0 %v537
    %677 = vmatpush.xpose.msra.mxu0 %v536
    %678 = vmatpush.xpose.msra.mxu0 %v535
    %679 = vmatpush.xpose.msra.mxu0 %v534
    %680 = vmatpush.xpose.msra.mxu0 %v533
    %681 = vmatpush.xpose.msra.mxu0 %v532
    %682 = vmatpush.xpose.msra.mxu0 %v531
    %683 = vmatpush.xpose.msra.mxu0 %v530
    %684 = vmatpush.xpose.msra.mxu0 %v529
    %685 = vmatpush.xpose.msra.mxu0 %v528
    %686 = vmatpush.xpose.msra.mxu0 %v527
    %687 = vmatmul.f32.gmra.mxu0 %v655
    %v688 = vpop.f32.mrf.mxu0
    %v689 = vadd.f32 0.0, %v688
    %690 = vmatmul.f32.gmra.mxu0 %v656
    %v691 = vpop.f32.mrf.mxu0
    %v692 = vadd.f32 0.0, %v691
    %693 = vmatmul.f32.gmra.mxu0 %v657
    %v694 = vpop.f32.mrf.mxu0
    %v695 = vadd.f32 0.0, %v694
    %696 = vmatmul.f32.gmra.mxu0 %v658
    %v697 = vpop.f32.mrf.mxu0
    %v698 = vadd.f32 0.0, %v697
    %699 = vmatmul.f32.gmra.mxu0 %v659
    %v700 = vpop.f32.mrf.mxu0
    %v701 = vadd.f32 0.0, %v700
    %702 = vmatmul.f32.gmra.mxu0 %v660
    %v703 = vpop.f32.mrf.mxu0
    %v704 = vadd.f32 0.0, %v703
    %705 = vmatmul.f32.gmra.mxu0 %v661
    %v706 = vpop.f32.mrf.mxu0
    %v707 = vadd.f32 0.0, %v706
    %708 = vmatmul.f32.gmra.mxu0 %v662
    %v709 = vpop.f32.mrf.mxu0
    %v710 = vadd.f32 0.0, %v709
    %711 = vmatmul.f32.gmra.mxu0 %v663
    %v712 = vpop.f32.mrf.mxu0
    %v713 = vadd.f32 0.0, %v712
    %714 = vmatmul.f32.gmra.mxu0 %v664
    %v715 = vpop.f32.mrf.mxu0
    %v716 = vadd.f32 0.0, %v715
    %717 = vmatmul.f32.gmra.mxu0 %v665
    %v718 = vpop.f32.mrf.mxu0
    %v719 = vadd.f32 0.0, %v718
    %720 = vmatmul.f32.gmra.mxu0 %v666
    %v721 = vpop.f32.mrf.mxu0
    %v722 = vadd.f32 0.0, %v721
    %723 = vmatmul.f32.gmra.mxu0 %v667
    %v724 = vpop.f32.mrf.mxu0
    %v725 = vadd.f32 0.0, %v724
    %726 = vmatmul.f32.gmra.mxu0 %v668
    %v727 = vpop.f32.mrf.mxu0
    %v728 = vadd.f32 0.0, %v727
    %729 = vmatmul.f32.gmra.mxu0 %v669
    %v730 = vpop.f32.mrf.mxu0
    %v731 = vadd.f32 0.0, %v730
    %732 = vmatmul.f32.gmra.mxu0 %v670
    %v733 = vpop.f32.mrf.mxu0
    %v734 = vadd.f32 0.0, %v733
    %735 = vdwg.mxu0
    %v736 = vsub.f32 %v607, %v689
    %v737 = vsub.f32 %v608, %v692
    %v738 = vsub.f32 %v609, %v695
    %v739 = vsub.f32 %v610, %v698
    %v740 = vsub.f32 %v611, %v701
    %v741 = vsub.f32 %v612, %v704
    %v742 = vsub.f32 %v613, %v707
    %v743 = vsub.f32 %v614, %v710
    %v744 = vsub.f32 %v615, %v713
    %v745 = vsub.f32 %v616, %v716
    %v746 = vsub.f32 %v617, %v719
    %v747 = vsub.f32 %v618, %v722
    %v748 = vsub.f32 %v619, %v725
    %v749 = vsub.f32 %v620, %v728
    %v750 = vsub.f32 %v621, %v731
    %v751 = vsub.f32 %v622, %v734
    %v752 = vmax.f32 %v736, 0.0
    %v753 = vmax.f32 %v737, 0.0
    %v754 = vmax.f32 %v738, 0.0
    %v755 = vmax.f32 %v739, 0.0
    %v756 = vmax.f32 %v740, 0.0
    %v757 = vmax.f32 %v741, 0.0
    %v758 = vmax.f32 %v742, 0.0
    %v759 = vmax.f32 %v743, 0.0
    %v760 = vmax.f32 %v744, 0.0
    %v761 = vmax.f32 %v745, 0.0
    %v762 = vmax.f32 %v746, 0.0
    %v763 = vmax.f32 %v747, 0.0
    %v764 = vmax.f32 %v748, 0.0
    %v765 = vmax.f32 %v749, 0.0
    %v766 = vmax.f32 %v750, 0.0
    %v767 = vmax.f32 %v751, 0.0
    %v768 = vperm.slane %v639, 0
    %v769 = vsub.f32 %v768, %v689
    %v770 = vsub.f32 %v768, %v692
    %v771 = vsub.f32 %v768, %v695
    %v772 = vsub.f32 %v768, %v698
    %v773 = vsub.f32 %v768, %v701
    %v774 = vsub.f32 %v768, %v704
    %v775 = vsub.f32 %v768, %v707
    %v776 = vsub.f32 %v768, %v710
    %v777 = vsub.f32 %v768, %v713
    %v778 = vsub.f32 %v768, %v716
    %v779 = vsub.f32 %v768, %v719
    %v780 = vsub.f32 %v768, %v722
    %v781 = vsub.f32 %v768, %v725
    %v782 = vsub.f32 %v768, %v728
    %v783 = vsub.f32 %v768, %v731
    %v784 = vsub.f32 %v768, %v734
    %v785 = vmax.f32 %v769, 0.0
    %v786 = vmax.f32 %v770, 0.0
    %v787 = vmax.f32 %v771, 0.0
    %v788 = vmax.f32 %v772, 0.0
    %v789 = vmax.f32 %v773, 0.0
    %v790 = vmax.f32 %v774, 0.0
    %v791 = vmax.f32 %v775, 0.0
    %v792 = vmax.f32 %v776, 0.0
    %v793 = vmax.f32 %v777, 0.0
    %v794 = vmax.f32 %v778, 0.0
    %v795 = vmax.f32 %v779, 0.0
    %v796 = vmax.f32 %v780, 0.0
    %v797 = vmax.f32 %v781, 0.0
    %v798 = vmax.f32 %v782, 0.0
    %v799 = vmax.f32 %v783, 0.0
    %v800 = vmax.f32 %v784, 0.0
    %v801 = vlaneseq
    %v802 = vand.u32 %v801, 127
    %vm803 = vcmp.lt.s32.totalorder %v802, 8
    %v804 = vlaneseq
    %v805 = vshrl.u32 %v804, 7
    %v806 = vadd.s32 %v805, 8
    %v807 = vadd.s32 %v805, 16
    %v808 = vadd.s32 %v805, 24
    %v809 = vadd.s32 %v805, 32
    %v810 = vadd.s32 %v805, 40
    %v811 = vadd.s32 %v805, 48
    %v812 = vadd.s32 %v805, 56
    %v813 = vadd.s32 %v805, 64
    %v814 = vadd.s32 %v805, 72
    %v815 = vadd.s32 %v805, 80
    %v816 = vadd.s32 %v805, 88
    %v817 = vadd.s32 %v805, 96
    %v818 = vadd.s32 %v805, 104
    %v819 = vadd.s32 %v805, 112
    %v820 = vadd.s32 %v805, 120
    %vm821 = vcmp.lt.s32.totalorder %v805, 8
    %vm822 = vcmp.lt.s32.totalorder %v806, 8
    %vm823 = vcmp.lt.s32.totalorder %v807, 8
    %vm824 = vcmp.lt.s32.totalorder %v808, 8
    %vm825 = vcmp.lt.s32.totalorder %v809, 8
    %vm826 = vcmp.lt.s32.totalorder %v810, 8
    %vm827 = vcmp.lt.s32.totalorder %v811, 8
    %vm828 = vcmp.lt.s32.totalorder %v812, 8
    %vm829 = vcmp.lt.s32.totalorder %v813, 8
    %vm830 = vcmp.lt.s32.totalorder %v814, 8
    %vm831 = vcmp.lt.s32.totalorder %v815, 8
    %vm832 = vcmp.lt.s32.totalorder %v816, 8
    %vm833 = vcmp.lt.s32.totalorder %v817, 8
    %vm834 = vcmp.lt.s32.totalorder %v818, 8
    %vm835 = vcmp.lt.s32.totalorder %v819, 8
    %vm836 = vcmp.lt.s32.totalorder %v820, 8
    %v837 = vsel %vm803, 1, 0
    %vm838 = vcmp.eq.s32.totalorder %v837, 1
    %v839 = vsel %vm838, %v752, 0.0
    %v840 = vsel %vm838, %v753, 0.0
    %v841 = vsel %vm838, %v754, 0.0
    %v842 = vsel %vm838, %v755, 0.0
    %v843 = vsel %vm838, %v756, 0.0
    %v844 = vsel %vm838, %v757, 0.0
    %v845 = vsel %vm838, %v758, 0.0
    %v846 = vsel %vm838, %v759, 0.0
    %v847 = vsel %vm838, %v760, 0.0
    %v848 = vsel %vm838, %v761, 0.0
    %v849 = vsel %vm838, %v762, 0.0
    %v850 = vsel %vm838, %v763, 0.0
    %v851 = vsel %vm838, %v764, 0.0
    %v852 = vsel %vm838, %v765, 0.0
    %v853 = vsel %vm838, %v766, 0.0
    %v854 = vsel %vm838, %v767, 0.0
    %v855 = vsel %vm821, 1, 0
    %v856 = vsel %vm822, 1, 0
    %v857 = vsel %vm823, 1, 0
    %v858 = vsel %vm824, 1, 0
    %v859 = vsel %vm825, 1, 0
    %v860 = vsel %vm826, 1, 0
    %v861 = vsel %vm827, 1, 0
    %v862 = vsel %vm828, 1, 0
    %v863 = vsel %vm829, 1, 0
    %v864 = vsel %vm830, 1, 0
    %v865 = vsel %vm831, 1, 0
    %v866 = vsel %vm832, 1, 0
    %v867 = vsel %vm833, 1, 0
    %v868 = vsel %vm834, 1, 0
    %v869 = vsel %vm835, 1, 0
    %v870 = vsel %vm836, 1, 0
    %vm871 = vcmp.eq.s32.totalorder %v855, 1
    %vm872 = vcmp.eq.s32.totalorder %v856, 1
    %vm873 = vcmp.eq.s32.totalorder %v857, 1
    %vm874 = vcmp.eq.s32.totalorder %v858, 1
    %vm875 = vcmp.eq.s32.totalorder %v859, 1
    %vm876 = vcmp.eq.s32.totalorder %v860, 1
    %vm877 = vcmp.eq.s32.totalorder %v861, 1
    %vm878 = vcmp.eq.s32.totalorder %v862, 1
    %vm879 = vcmp.eq.s32.totalorder %v863, 1
    %vm880 = vcmp.eq.s32.totalorder %v864, 1
    %vm881 = vcmp.eq.s32.totalorder %v865, 1
    %vm882 = vcmp.eq.s32.totalorder %v866, 1
    %vm883 = vcmp.eq.s32.totalorder %v867, 1
    %vm884 = vcmp.eq.s32.totalorder %v868, 1
    %vm885 = vcmp.eq.s32.totalorder %v869, 1
    %vm886 = vcmp.eq.s32.totalorder %v870, 1
    %v887 = vsel %vm871, %v785, 0.0
    %v888 = vsel %vm872, %v786, 0.0
    %v889 = vsel %vm873, %v787, 0.0
    %v890 = vsel %vm874, %v788, 0.0
    %v891 = vsel %vm875, %v789, 0.0
    %v892 = vsel %vm876, %v790, 0.0
    %v893 = vsel %vm877, %v791, 0.0
    %v894 = vsel %vm878, %v792, 0.0
    %v895 = vsel %vm879, %v793, 0.0
    %v896 = vsel %vm880, %v794, 0.0
    %v897 = vsel %vm881, %v795, 0.0
    %v898 = vsel %vm882, %v796, 0.0
    %v899 = vsel %vm883, %v797, 0.0
    %v900 = vsel %vm884, %v798, 0.0
    %v901 = vsel %vm885, %v799, 0.0
    %v902 = vsel %vm886, %v800, 0.0
    %903 = vadd.xlane.f32.xlu0 %v839
    %v904 = vpop.xlane.xlu0 %903
    %905 = vadd.xlane.f32.xlu0 %v840
    %v906 = vpop.xlane.xlu0 %905
    %907 = vadd.xlane.f32.xlu0 %v841
    %v908 = vpop.xlane.xlu0 %907
    %909 = vadd.xlane.f32.xlu0 %v842
    %v910 = vpop.xlane.xlu0 %909
    %911 = vadd.xlane.f32.xlu0 %v843
    %v912 = vpop.xlane.xlu0 %911
    %913 = vadd.xlane.f32.xlu0 %v844
    %v914 = vpop.xlane.xlu0 %913
    %915 = vadd.xlane.f32.xlu0 %v845
    %v916 = vpop.xlane.xlu0 %915
    %917 = vadd.xlane.f32.xlu0 %v846
    %v918 = vpop.xlane.xlu0 %917
    %919 = vadd.xlane.f32.xlu0 %v847
    %v920 = vpop.xlane.xlu0 %919
    %921 = vadd.xlane.f32.xlu0 %v848
    %v922 = vpop.xlane.xlu0 %921
    %923 = vadd.xlane.f32.xlu0 %v849
    %v924 = vpop.xlane.xlu0 %923
    %925 = vadd.xlane.f32.xlu0 %v850
    %v926 = vpop.xlane.xlu0 %925
    %927 = vadd.xlane.f32.xlu0 %v851
    %v928 = vpop.xlane.xlu0 %927
    %929 = vadd.xlane.f32.xlu0 %v852
    %v930 = vpop.xlane.xlu0 %929
    %931 = vadd.xlane.f32.xlu0 %v853
    %v932 = vpop.xlane.xlu0 %931
    %933 = vadd.xlane.f32.xlu0 %v854
    %v934 = vpop.xlane.xlu0 %933
    %v951 = vperm.slane %v904, %v802
    %v952 = vadd.s32 %v802, 4294967288
    %v953 = vperm.slane %v906, %v952
    %vm954 = vcmask 130112
    %v955 = vsel %vm954, %v953, %v951
    %v956 = vadd.s32 %v802, 4294967280
    %v957 = vperm.slane %v908, %v956
    %vm958 = vcmask 195712
    %v959 = vsel %vm958, %v957, %v955
    %v960 = vadd.s32 %v802, 4294967272
    %v961 = vperm.slane %v910, %v960
    %vm962 = vcmask 261312
    %v963 = vsel %vm962, %v961, %v959
    %v964 = vadd.s32 %v802, 4294967264
    %v965 = vperm.slane %v912, %v964
    %vm966 = vcmask 326912
    %v967 = vsel %vm966, %v965, %v963
    %v968 = vadd.s32 %v802, 4294967256
    %v969 = vperm.slane %v914, %v968
    %vm970 = vcmask 392512
    %v971 = vsel %vm970, %v969, %v967
    %v972 = vadd.s32 %v802, 4294967248
    %v973 = vperm.slane %v916, %v972
    %vm974 = vcmask 458112
    %v975 = vsel %vm974, %v973, %v971
    %v976 = vadd.s32 %v802, 4294967240
    %v977 = vperm.slane %v918, %v976
    %vm978 = vcmask 523712
    %v979 = vsel %vm978, %v977, %v975
    %v980 = vadd.s32 %v802, 4294967232
    %v981 = vperm.slane %v920, %v980
    %vm982 = vcmask 589312
    %v983 = vsel %vm982, %v981, %v979
    %v984 = vadd.s32 %v802, 4294967224
    %v985 = vperm.slane %v922, %v984
    %vm986 = vcmask 654912
    %v987 = vsel %vm986, %v985, %v983
    %v988 = vadd.s32 %v802, 4294967216
    %v989 = vperm.slane %v924, %v988
    %vm990 = vcmask 720512
    %v991 = vsel %vm990, %v989, %v987
    %v992 = vadd.s32 %v802, 4294967208
    %v993 = vperm.slane %v926, %v992
    %vm994 = vcmask 786112
    %v995 = vsel %vm994, %v993, %v991
    %v996 = vadd.s32 %v802, 4294967200
    %v997 = vperm.slane %v928, %v996
    %vm998 = vcmask 851712
    %v999 = vsel %vm998, %v997, %v995
    %v1000 = vadd.s32 %v802, 4294967192
    %v1001 = vperm.slane %v930, %v1000
    %vm1002 = vcmask 917312
    %v1003 = vsel %vm1002, %v1001, %v999
    %v1004 = vadd.s32 %v802, 4294967184
    %v1005 = vperm.slane %v932, %v1004
    %vm1006 = vcmask 982912
    %v1007 = vsel %vm1006, %v1005, %v1003
    %v1008 = vadd.s32 %v802, 4294967176
    %v1009 = vperm.slane %v934, %v1008
    %vm1010 = vcmask 1048512
    %v1011 = vsel %vm1010, %v1009, %v1007
    %1013 = vst [vmem:[#allocation7] sm:$0x1] %v1011
    %v1014 = vadd.f32 %v887, %v888
    %v1015 = vadd.f32 %v1014, %v889
    %v1016 = vadd.f32 %v1015, %v890
    %v1017 = vadd.f32 %v1016, %v891
    %v1018 = vadd.f32 %v1017, %v892
    %v1019 = vadd.f32 %v1018, %v893
    %v1020 = vadd.f32 %v1019, %v894
    %v1021 = vadd.f32 %v1020, %v895
    %v1022 = vadd.f32 %v1021, %v896
    %v1023 = vadd.f32 %v1022, %v897
    %v1024 = vadd.f32 %v1023, %v898
    %v1025 = vadd.f32 %v1024, %v899
    %v1026 = vadd.f32 %v1025, %v900
    %v1027 = vadd.f32 %v1026, %v901
    %v1028 = vadd.f32 %v1027, %v902
    %v1029 = vrot.slane %v1028, 4
    %v1030 = vadd.f32 %v1028, %v1029
    %v1031 = vrot.slane %v1030, 2
    %v1032 = vadd.f32 %v1030, %v1031
    %v1033 = vrot.slane %v1032, 1
    %v1034 = vadd.f32 %v1032, %v1033
    %1035 = vst [vmem:[#allocation8] sm:$0x1] %v1034
    // Predicated region
    $region18: #{tpu_custom_call.1} parent=1 // pred_check
      _
    $region19: #{tpu_custom_call.1} parent=1 // pred_check_branch
      %1037 = sbr.rel (0) target = $region21
    $region20: #{tpu_custom_call.1} parent=1 // pred_region
      %1039 = vsyncadd [#allocation4], 0
      %s1041 = sshll.u32 [#allocation7], 4
      %s1042 = int_to_ptr.vmem [resolvable:$true] %s1041
      %s1043 = sshll.u32 %s2, 4
      %s1044 = int_to_ptr.hbm [resolvable:$true] %s1043
      %1046 = dma.vmem_to_hbm [thread:$0]  %s1042, 16, %s1044, [#allocation4]
    $region21: #{tpu_custom_call.1} parent=1 // pred_fallthru
      _
    // Predicated region
    $region22: #{tpu_custom_call.1} parent=1 // pred_check
      _
    $region23: #{tpu_custom_call.1} parent=1 // pred_check_branch
      %1048 = sbr.rel (0) target = $region25
    $region24: #{tpu_custom_call.1} parent=1 // pred_region
      %1050 = vsyncadd [#allocation9], 0
      %s1052 = sshll.u32 [#allocation8], 4
      %s1053 = int_to_ptr.vmem [resolvable:$true] %s1052
      %s1054 = sshll.u32 %s3, 4
      %s1055 = int_to_ptr.hbm [resolvable:$true] %s1054
      %1057 = dma.vmem_to_hbm [thread:$0]  %s1053, 16, %s1055, [#allocation9]
    $region25: #{tpu_custom_call.1} parent=1 // pred_fallthru
      _
    // Predicated region
    $region26: #{tpu_custom_call.1} parent=1 // pred_check
      _
    $region27: #{tpu_custom_call.1} parent=1 // pred_check_branch
      %1059 = sbr.rel (0) target = $region29
    $region28: #{tpu_custom_call.1} parent=1 // pred_region
      %1061 = dma.done [#allocation4], 16
    $region29: #{tpu_custom_call.1} parent=1 // pred_fallthru
      _
    // Predicated region
    $region30: #{tpu_custom_call.1} parent=1 // pred_check
      _
    $region31: #{tpu_custom_call.1} parent=1 // pred_check_branch
      %1063 = sbr.rel (0) target = $region33
    $region32: #{tpu_custom_call.1} parent=1 // pred_region
      %1065 = dma.done [#allocation9], 16
    $region33: #{tpu_custom_call.1} parent=1 // pred_fallthru
      _
    %1066 = vsyncpa [#allocation3], 1
    %1067 = vsyncpa [#allocation6], 1
    %1068 = vsyncpa [#allocation4], 1
    %1069 = vsyncpa [#allocation9], 1

</llo_original>
